<compile_context>
chip_gen: v6e
topology: v6e:2x2x1
jax: 0.10.0
libtpu: 0.0.40
codegen_flags: <defaults>
</compile_context>

<pallas_src>
import functools

import numpy as np
import jax
import jax.numpy as jnp
from jax.experimental import pallas as pl
from jax.experimental.pallas import tpu as pltpu


def _round_up(n, m):
    return ((n + m - 1) // m) * m


def _tpu_hw():
    """(vmem_capacity_bytes, is_v5e) with safe fallbacks."""
    vmem_cap = 64 << 20          # conservative default (v7x); v5e/v6e have 128 MiB
    is_v5e = False
    try:
        info = pltpu.get_tpu_info()
        cap = getattr(info, "vmem_capacity_bytes", None)
        if cap:
            vmem_cap = int(cap)
    except Exception:
        pass
    try:
        kind = jax.devices()[0].device_kind.lower()
        is_v5e = ("v5 lite" in kind) or ("v5e" in kind) or ("v5lite" in kind)
    except Exception:
        pass
    return vmem_cap, is_v5e


@functools.lru_cache(maxsize=None)
def _fold_basis(L):
    """Static (numpy) per-frame pieces of the linear map series -> trend output.

    Semantics match torch.stft / torch.istft defaults: hop = n_fft//4,
    rectangular window, center=True (reflect pad), onesided, un-normalized;
    istft divides by the window envelope and trims n_fft//2 per side.

    Returns (all frame-local, shapes use n_fft=N, D=N//2+1, T=L//hop+1):
      cosT, sinT : (N, D)    analysis DFT basis (spec_r = frame @ cosT,
                              spec_i = frame @ (-sinT))
      SynA, SynB : (T, D, N) per-frame synthesis (irfft coeffs / OLA envelope,
                              zeroed outside [0, L))
      rows       : (T, N)    analysis sample -> series row index (reflect fold)
      cols       : (T, N)    frame-local output sample -> series column index
    """
    n_fft = L // 8
    hop = n_fft // 4
    D = n_fft // 2 + 1
    T = L // hop + 1
    P = L + n_fft
    half = n_fft // 2

    n = np.arange(n_fft)
    f = np.arange(D)
    ang = 2.0 * np.pi * np.outer(f, n) / n_fft                  # (D, N)
    cosT = np.cos(ang).T                                        # (N, D)
    sinT = np.sin(ang).T                                        # (N, D)

    # irfft coefficients: y[m] = sum_f A[f,m]*Re z_f + Bm[f,m]*Im z_f
    w = np.where((f == 0) | (2 * f == n_fft), 1.0, 2.0)
    A = (w[:, None] * np.cos(ang)) / n_fft                      # (D, N)
    Bm = (-(w[:, None]) * np.sin(ang)) / n_fft                  # (D, N)

    # rectangular-window OLA envelope over the padded length P
    env = np.zeros(P, np.float64)
    for t in range(T):
        env[t * hop:t * hop + n_fft] += 1.0

    t_idx = np.arange(T)
    m = np.arange(n_fft)
    cols = t_idx[:, None] * hop - half + m[None, :]             # (T, N) output col
    valid = (cols >= 0) & (cols < L)
    cols_c = np.clip(cols, 0, L - 1)
    scale = np.where(valid, 1.0 / env[cols_c + half], 0.0)      # envelope div + trim
    SynA = A[None, :, :] * scale[:, None, :]                    # (T, D, N)
    SynB = Bm[None, :, :] * scale[:, None, :]

    # analysis rows folded through the reflect padding: p = t*hop + n
    p = t_idx[:, None] * hop + n[None, :]                       # (T, N)
    src = p - half
    src = np.where(src < 0, -src, src)
    src = np.where(src > L - 1, 2 * (L - 1) - src, src)

    return (cosT.astype(np.float32), sinT.astype(np.float32),
            SynA.astype(np.float32), SynB.astype(np.float32),
            src.astype(np.int32), cols_c.astype(np.int32))


def _fold_weight(tfb_r, tfb_i, L, Kp, Np):
    """Folded (Kp, Np) f32 matrix W with out = series @ W (zero padded)."""
    n_fft = L // 8
    D = n_fft // 2 + 1
    cosT, sinT, SynA, SynB, rows, cols = (jnp.asarray(a) for a in _fold_basis(L))

    # einsum('bdmn,mnn->bdmn') in comp_mul only touches the per-frame diagonal.
    fidx = jnp.arange(D)
    dr = tfb_r[:, fidx, fidx].astype(jnp.float32)               # (T, D)
    di = tfb_i[:, fidx, fidx].astype(jnp.float32)

    # z_r = spec_r*(1+dr) - spec_i*di ; z_i = spec_i*(1+di) - spec_r*dr
    # (q_i = -q_r in the PyTorch comp_mul), folded into column-scaled analysis.
    CrB = cosT[None] * (1.0 + dr)[:, None, :] + sinT[None] * di[:, None, :]
    CiB = (-sinT[None]) * (1.0 + di)[:, None, :] - cosT[None] * dr[:, None, :]

    hp = jax.lax.Precision.HIGHEST
    G = (jnp.einsum('tnd,tdm->tnm', CrB, SynA, precision=hp)
         + jnp.einsum('tnd,tdm->tnm', CiB, SynB, precision=hp))  # (T, N, N)

    W = jnp.zeros((Kp, Np), jnp.float32)
    W = W.at[rows[:, :, None], cols[:, None, :]].add(G)
    return W


def _trend_matmul_kernel(x_ref, w_ref, o_ref):
    # Whole forward per (row-tile, col-tile): one MXU matmul, f32 accumulation.
    o_ref[...] = jnp.dot(x_ref[...], w_ref[...],
                         preferred_element_type=jnp.float32).astype(o_ref.dtype)


def trend_encoder_forward(x, tfb_r, tfb_i):
    """x: (B, L, n_vars); tfb_*: (n_frame, d_spec, d_spec) -> (B, n_vars, L)."""
    B, L, V = x.shape
    assert L % 32 == 0 and L >= 32, (
        "TrendEncoder requires seq_len to be a positive multiple of 32 "
        "(n_fft = L//8 and hop = n_fft//4 must be integral)")
    n_fft = L // 8
    D = n_fft // 2 + 1
    T = L // (n_fft // 4) + 1
    assert tfb_r.shape == (T, D, D) and tfb_i.shape == (T, D, D)

    BD = B * V
    vmem_cap, is_v5e = _tpu_hw()
    budget = int(0.75 * vmem_cap)

    # Row tile: bf16 operands need a multiple-of-16 sublane tile; 256-tall on
    # v6e/v7x (2x256x256 MXU) when there are enough rows, 128 otherwise.
    if (not is_v5e) and BD >= 256:
        TM = 256
    else:
        TM = min(128, _round_up(BD, 16))
    BDp = _round_up(BD, TM)
    n_rows = BDp // TM
    Kp = _round_up(L, 128)

    def _need(tn):  # double-buffered bf16 inputs + f32 output tiles
        return 2 * (TM * Kp * 2) + 2 * (Kp * tn * 2) + 2 * (TM * tn * 4)

    Np = _round_up(L, 128)
    if _need(Np) <= budget:
        if n_rows == 1 and Np >= 256:
            # Only one row tile: split columns in two so both TCs (v7x) get work.
            Np = _round_up(L, 256)
            TN = Np // 2
        else:
            TN = Np            # full-width W: loaded once, lane-dense stores
    else:
        # Very long series: column-tile W; pad Np to a wide multiple of 128
        # (never fall back to narrow 128-lane tiles unless VMEM forces it).
        best = None
        for tn in (512, 384, 256, 128):
            if _need(tn) > budget:
                continue
            key = (_round_up(L, tn), -tn)        # least padding, then widest
            if best is None or key < best[0]:
                best = (key, tn)
        TN = best[1] if best is not None else 128
        Np = _round_up(L, TN)
    n_cols = Np // TN

    vmem_limit = int(min(budget, max(_need(TN) + (8 << 20), 32 << 20)))

    # Operands at the kernel boundary: bf16 (f32 accumulation on the MXU).
    W = _fold_weight(tfb_r, tfb_i, L, Kp, Np).astype(jnp.bfloat16)
    xs = jnp.transpose(x, (0, 2, 1)).reshape(BD, L).astype(jnp.bfloat16)
    xs = jnp.zeros((BDp, Kp), jnp.bfloat16).at[:BD, :L].set(xs)

    if n_cols == 1:
        grid = (n_rows,)
        in_specs = [pl.BlockSpec((TM, Kp), lambda i: (i, 0)),
                    pl.BlockSpec((Kp, Np), lambda i: (0, 0))]
        out_specs = pl.BlockSpec((TM, Np), lambda i: (i, 0))
        dims = ("parallel",)
    else:
        # Rows innermost: each W column tile is DMA'd exactly once.
        grid = (n_cols, n_rows)
        in_specs = [pl.BlockSpec((TM, Kp), lambda j, i: (i, 0)),
                    pl.BlockSpec((Kp, TN), lambda j, i: (0, j))]
        out_specs = pl.BlockSpec((TM, TN), lambda j, i: (i, j))
        dims = ("parallel", "parallel")

    out = pl.pallas_call(
        _trend_matmul_kernel,
        out_shape=jax.ShapeDtypeStruct((BDp, Np), jnp.float32),
        grid=grid,
        in_specs=in_specs,
        out_specs=out_specs,
        compiler_params=pltpu.CompilerParams(
            dimension_semantics=dims,
            vmem_limit_bytes=vmem_limit),
    )(xs, W)

    return out[:BD, :L].reshape(B, V, L)


def _reference_forward(x, tfb_r, tfb_i):
    """Pure-JAX f32 reference (explicit stft / istft with torch semantics)."""
    B, L, V = x.shape
    N = L // 8
    hop = N // 4
    D = N // 2 + 1
    T = L // hop + 1
    xs = jnp.transpose(x, (0, 2, 1)).reshape(B * V, L)
    xpad = jnp.pad(xs, ((0, 0), (N // 2, N // 2)), mode="reflect")
    frames = jnp.stack([xpad[:, t * hop:t * hop + N] for t in range(T)], axis=1)
    spec = jnp.fft.rfft(frames, axis=-1)                          # (BD, T, D)
    idx = jnp.arange(D)
    dr = tfb_r[:, idx, idx]
    di = tfb_i[:, idx, idx]
    qr = spec.real * dr - spec.imag * di
    z = (spec.real + qr) + 1j * (spec.imag - qr)                  # q_i = -q_r
    # irfft-equivalent inverse (Hermitian extension; DC/Nyquist imag dropped)
    zfull = jnp.concatenate([z, jnp.conj(z[..., 1:-1][..., ::-1])], axis=-1)
    yfr = jnp.real(jnp.fft.ifft(zfull, axis=-1))                  # (BD, T, N)
    P = L + N
    ola = jnp.zeros((B * V, P), jnp.float32)
    env = jnp.zeros((P,), jnp.float32)
    for t in range(T):
        ola = ola.at[:, t * hop:t * hop + N].add(yfr[:, t].astype(jnp.float32))
        env = env.at[t * hop:t * hop + N].add(1.0)
    out = ola[:, N // 2:N // 2 + L] / env[N // 2:N // 2 + L]
    return out.reshape(B, V, L)


if __name__ == "__main__":
    # configs.seq_len = 64 -> n_fft=8, hop=2, d_spec=5, n_frame=33
    B, L, n_vars = 2, 64, 4
    n_fft = L // 8
    d_spec = n_fft // 2 + 1
    n_frame = L // (n_fft // 4) + 1

    key = jax.random.PRNGKey(0)
    kx, kr, ki = jax.random.split(key, 3)
    x = jax.random.normal(kx, (B, L, n_vars), jnp.float32)
    tfb_r = jax.random.normal(kr, (n_frame, d_spec, d_spec), jnp.float32)
    tfb_i = jax.random.normal(ki, (n_frame, d_spec, d_spec), jnp.float32)

    fwd = jax.jit(trend_encoder_forward)
    out = jax.block_until_ready(fwd(x, tfb_r, tfb_i))
    assert out.shape == (B, n_vars, L)

    # --- validation ---------------------------------------------------------
    ref = jax.block_until_ready(_reference_forward(x, tfb_r, tfb_i))
    scale = float(jnp.max(jnp.abs(ref))) + 1e-6

    Kp = _round_up(L, 128)
    W = _fold_weight(tfb_r, tfb_i, L, Kp, Kp)[:L, :L]
    xs = jnp.transpose(x, (0, 2, 1)).reshape(B * n_vars, L)

    # (a) fold semantics in f32 vs explicit stft/istft reference (tight)
    ref_fold = jnp.dot(xs, W, precision=jax.lax.Precision.HIGHEST)
    err_fold = float(jnp.max(jnp.abs(ref_fold.reshape(B, n_vars, L) - ref)))
    assert err_fold / scale < 1e-3, f"fold vs stft/istft reference: rel {err_fold / scale}"

    # (b) kernel vs matched-precision (bf16 operands, f32 accum) XLA matmul (tight)
    ref_mm = jnp.dot(xs.astype(jnp.bfloat16), W.astype(jnp.bfloat16),
                     preferred_element_type=jnp.float32).reshape(B, n_vars, L)
    err_mm = float(jnp.max(jnp.abs(out - ref_mm)))
    assert err_mm < 5e-3, f"kernel vs matched-precision matmul: {err_mm}"

    # (c) end-to-end (bf16 kernel) vs f32 reference, relative
    err = float(jnp.max(jnp.abs(out - ref)))
    assert err / scale < 2e-2, f"kernel vs reference: rel {err / scale}"

    print("KERNEL_OK")
</pallas_src>

<mosaic_0001>
module attributes {stable_mosaic.version = 11 : i64} {
  func.func private @main(%arg0: i32) attributes {dimension_semantics = [#tpu.dimension_semantics<core_parallel>], iteration_bounds = array<i64: 2>, tpu.core_type = #tpu.core_type<sc_scalar_subcore>, window_params = []} {
    return
  }
}

module attributes {stable_mosaic.version = 11 : i64} {
  func.func private @main(%arg0: i32) attributes {dimension_semantics = [#tpu.dimension_semantics<core_parallel>], iteration_bounds = array<i64: 2>, tpu.core_type = #tpu.core_type<sc_scalar_subcore>, window_params = []} {
    return
  }
}

module attributes {stable_mosaic.version = 11 : i64} {
  func.func @_trend_matmul_kernel(%arg0: i32, %arg1: memref<16x128xbf16, #tpu.memory_space<vmem>>, %arg2: memref<128x128xbf16, #tpu.memory_space<vmem>>, %arg3: memref<16x128xf32, #tpu.memory_space<vmem>>) attributes {dimension_semantics = [#tpu.dimension_semantics<parallel>], iteration_bounds = array<i64: 1>, scalar_prefetch = 0 : i64, scratch_operands = 0 : i64, tpu.core_type = #tpu.core_type<tc>, window_params = [{transform_indices = @transform_0, window_bounds = array<i64: 16, 128>}, {pipeline_mode = #tpu.pipeline_mode<synchronous>, transform_indices = @transform_1, window_bounds = array<i64: 128, 128>}, {transform_indices = @transform_2, window_bounds = array<i64: 16, 128>}]} {
    %c0 = arith.constant 0 : index
    %c0_0 = arith.constant 0 : index
    %0 = vector.load %arg1[%c0, %c0_0] : memref<16x128xbf16, #tpu.memory_space<vmem>>, vector<16x128xbf16>
    %c0_1 = arith.constant 0 : index
    %c0_2 = arith.constant 0 : index
    %1 = vector.load %arg2[%c0_1, %c0_2] : memref<128x128xbf16, #tpu.memory_space<vmem>>, vector<128x128xbf16>
    %cst = arith.constant dense<0.000000e+00> : vector<16x128xf32>
    %2 = tpu.matmul %0, %1, %cst {dimension_numbers = #tpu.dot_dimension_numbers<[1], [0], [0], [1], [0, 0, 1, 1], [], []>} : vector<16x128xbf16>, vector<128x128xbf16>, vector<16x128xf32> -> vector<16x128xf32>
    %c0_3 = arith.constant 0 : index
    %c0_4 = arith.constant 0 : index
    %3 = vector.load %arg3[%c0_3, %c0_4] : memref<16x128xf32, #tpu.memory_space<vmem>>, vector<16x128xf32>
    tpu.vector_store %arg3[%c0_3, %c0_4], %2 {strides = array<i32>} : memref<16x128xf32, #tpu.memory_space<vmem>>, vector<16x128xf32>,
    return
  }
  func.func @transform_0(%arg0: i32) -> (i32, i32) {
    %c0_i32 = arith.constant 0 : i32
    %c0_i32_0 = arith.constant 0 : i32
    return %arg0, %c0_i32 : i32, i32
  }
  func.func @transform_1(%arg0: i32) -> (i32, i32) {
    %c0_i32 = arith.constant 0 : i32
    %c0_i32_0 = arith.constant 0 : i32
    %c0_i32_1 = arith.constant 0 : i32
    return %c0_i32, %c0_i32_0 : i32, i32
  }
  func.func @transform_2(%arg0: i32) -> (i32, i32) {
    %c0_i32 = arith.constant 0 : i32
    %c0_i32_0 = arith.constant 0 : i32
    return %arg0, %c0_i32 : i32, i32
  }
}

</mosaic_0001>

<llo_original>
// kernel: trend_encoder_forward.1
$region0: #{trend_encoder_forward.1}
  #allocation0 [shape = 'u32[]', space=smem, size = 0x4, offset = 0x4, fixed_abs, tag = 'smem constant byte address 0x4 - core index']
  #allocation1 [shape = 'u32[144,128]{1,0:T(1,128)}', space=vmem, size = 0x12000, scoped, tag = 'internal scratch']
  %s0 = inlined_call_operand.vmem [shape: bf16[16,128], index: 0, kind: input, shape index: {}]
  %s1 = inlined_call_operand.vmem [shape: bf16[128,128], index: 1, kind: input, shape index: {}]
  %s2 = inlined_call_operand.vmem [shape: f32[16,128], index: 2, kind: output, shape index: {}]
  %s3 = sld [smem:[#allocation0]]
  $region18: #{trend_encoder_forward.1} parent=0
    _
  %s5 = ssub.s32 1, %s3
  %s6 = scalar_select 0, %s5, %s3
  // Predicated region
  $region2: #{trend_encoder_forward.1} parent=0 // pred_check
    _
  $region3: #{trend_encoder_forward.1} parent=0 // pred_check_branch
    %8 = sbr.rel (0) target = $region5
  $region4: #{trend_encoder_forward.1} parent=0 // pred_region
    _
  $region5: #{trend_encoder_forward.1} parent=0 // pred_fallthru
    _
  // Predicated region
  $region6: #{trend_encoder_forward.1} parent=0 // pred_check
    _
  $region7: #{trend_encoder_forward.1} parent=0 // pred_check_branch
    %10 = sbr.rel (0) target = $region9
  $region8: #{trend_encoder_forward.1} parent=0 // pred_region
    _
  $region9: #{trend_encoder_forward.1} parent=0 // pred_fallthru
    _
  %v12 = vld [vmem:[%s0] sm:$0xf]
  %v13 = vld [vmem:[%s0 + $0x4] sm:$0xf]
  %v14 = vld [vmem:[%s1] sm:$0xf]
  %v15 = vld [vmem:[%s1 + $0x4] sm:$0xf]
  %v16 = vld [vmem:[%s1 + $0x8] sm:$0xf]
  %v17 = vld [vmem:[%s1 + $0xc] sm:$0xf]
  %v18 = vld [vmem:[%s1 + $0x10] sm:$0xf]
  %v19 = vld [vmem:[%s1 + $0x14] sm:$0xf]
  %v20 = vld [vmem:[%s1 + $0x18] sm:$0xf]
  %v21 = vld [vmem:[%s1 + $0x1c] sm:$0xf]
  %v22 = vld [vmem:[%s1 + $0x20] sm:$0xf]
  %v23 = vld [vmem:[%s1 + $0x24] sm:$0xf]
  %v24 = vld [vmem:[%s1 + $0x28] sm:$0xf]
  %v25 = vld [vmem:[%s1 + $0x2c] sm:$0xf]
  %v26 = vld [vmem:[%s1 + $0x30] sm:$0xf]
  %v27 = vld [vmem:[%s1 + $0x34] sm:$0xf]
  %v28 = vld [vmem:[%s1 + $0x38] sm:$0xf]
  %v29 = vld [vmem:[%s1 + $0x3c] sm:$0xf]
  %v32 = vunpack.c.l.b16 %v12
  %v33 = vunpack.c.l.b16 %v13
  %v34 = vpack.c.b16 %v33, %v32
  %v52 = vunpack.c.l.b16 %v14
  %v53 = vunpack.c.l.b16 %v15
  %v54 = vunpack.c.l.b16 %v16
  %v55 = vunpack.c.l.b16 %v17
  %v56 = vunpack.c.l.b16 %v18
  %v57 = vunpack.c.l.b16 %v19
  %v58 = vunpack.c.l.b16 %v20
  %v59 = vunpack.c.l.b16 %v21
  %v60 = vunpack.c.l.b16 %v22
  %v61 = vunpack.c.l.b16 %v23
  %v62 = vunpack.c.l.b16 %v24
  %v63 = vunpack.c.l.b16 %v25
  %v64 = vunpack.c.l.b16 %v26
  %v65 = vunpack.c.l.b16 %v27
  %v66 = vunpack.c.l.b16 %v28
  %v67 = vunpack.c.l.b16 %v29
  %v68 = vpack.c.b16 %v53, %v52
  %v69 = vpack.c.b16 %v55, %v54
  %v70 = vpack.c.b16 %v57, %v56
  %v71 = vpack.c.b16 %v59, %v58
  %v72 = vpack.c.b16 %v61, %v60
  %v73 = vpack.c.b16 %v63, %v62
  %v74 = vpack.c.b16 %v65, %v64
  %v75 = vpack.c.b16 %v67, %v66
  %84 = vmatprep.subr.bf16.mxu0 0
  %85 = vmatpush1.bf16.msra.mxu0 %v75
  %86 = vmatprep.subr.bf16.mxu0 0
  %87 = vmatpush1.bf16.msra.mxu0 %v74
  %88 = vmatprep.subr.bf16.mxu0 0
  %89 = vmatpush1.bf16.msra.mxu0 %v73
  %90 = vmatprep.subr.bf16.mxu0 0
  %91 = vmatpush1.bf16.msra.mxu0 %v72
  %92 = vmatprep.subr.bf16.mxu0 0
  %93 = vmatpush1.bf16.msra.mxu0 %v71
  %94 = vmatprep.subr.bf16.mxu0 0
  %95 = vmatpush1.bf16.msra.mxu0 %v70
  %96 = vmatprep.subr.bf16.mxu0 0
  %97 = vmatpush1.bf16.msra.mxu0 %v69
  %98 = vmatprep.subr.bf16.mxu0 0
  %99 = vmatpush1.bf16.msra.mxu0 %v68
  %100 = vmatprep.subr.bf16.mxu0 0
  %101 = vmatpush2.bf16.msra.mxu0 0
  %102 = vmatprep.subr.bf16.mxu0 0
  %103 = vmatpush2.bf16.msra.mxu0 0
  %104 = vmatprep.subr.bf16.mxu0 0
  %105 = vmatpush2.bf16.msra.mxu0 0
  %106 = vmatprep.subr.bf16.mxu0 0
  %107 = vmatpush2.bf16.msra.mxu0 0
  %108 = vmatprep.subr.bf16.mxu0 0
  %109 = vmatpush2.bf16.msra.mxu0 0
  %110 = vmatprep.subr.bf16.mxu0 0
  %111 = vmatpush2.bf16.msra.mxu0 0
  %112 = vmatprep.subr.bf16.mxu0 0
  %113 = vmatpush2.bf16.msra.mxu0 0
  %114 = vmatprep.subr.bf16.mxu0 0
  %115 = vmatpush2.bf16.msra.mxu0 0
  %116 = vmatprep.mubr.bf16.mxu0 0
  %117 = vmatmul.mubr.bf16.gmra.mxu0 %v34
  %v118 = vpop.f32.mrf.mxu0
  %v119 = vadd.f32 0.0, %v118
  %v120 = vpop.f32.mrf.mxu0
  %v121 = vpop.f32.mrf.mxu0
  %v122 = vadd.f32 0.0, %v121
  %v123 = vpop.f32.mrf.mxu0
  %124 = vdwg.mxu0
  %125 = vst [vmem:[%s2] sm:$0xff] %v119
  %126 = vst [vmem:[%s2 + $0x8] sm:$0xff] %v122
  // Predicated region
  $region10: #{trend_encoder_forward.1} parent=0 // pred_check
    _
  $region11: #{trend_encoder_forward.1} parent=0 // pred_check_branch
    %128 = sbr.rel (0) target = $region13
  $region12: #{trend_encoder_forward.1} parent=0 // pred_region
    _
  $region13: #{trend_encoder_forward.1} parent=0 // pred_fallthru
    _
  // Predicated region
  $region14: #{trend_encoder_forward.1} parent=0 // pred_check
    _
  $region15: #{trend_encoder_forward.1} parent=0 // pred_check_branch
    %130 = sbr.rel (0) target = $region17
  $region16: #{trend_encoder_forward.1} parent=0 // pred_region
    _
  $region17: #{trend_encoder_forward.1} parent=0 // pred_fallthru
    _

</llo_original>
